<compile_context>
chip_gen: v7x
topology: tpu7x:2x2x1
jax: 0.10.0
libtpu: 0.0.40
codegen_flags: <defaults>
</compile_context>

<pallas_src>
import functools
import math

import jax
import jax.numpy as jnp
from jax.experimental import pallas as pl
from jax.experimental.pallas import tpu as pltpu


def _rmlm_kernel(f_ref, g_ref, rf_ref, rg_ref, o_ref, *, inv_scaler):
    fm = jnp.dot(f_ref[...], rf_ref[...], preferred_element_type=jnp.float32)
    gm = jnp.dot(g_ref[...], rg_ref[...], preferred_element_type=jnp.float32)
    o_ref[...] = (fm * gm * inv_scaler).astype(o_ref.dtype)


def _round_up(x, m):
    return ((x + m - 1) // m) * m


def _pick_tile(dim, align, cap):
    """Largest multiple of `align` <= cap minimizing pad waste for `dim`."""
    padded = _round_up(dim, align)
    if padded <= cap:
        return padded
    best_t, best_waste = None, None
    t = (cap // align) * align
    while t >= align:
        waste = _round_up(padded, t) - padded
        if best_waste is None or waste < best_waste:
            best_t, best_waste = t, waste
        if waste == 0:
            break
        t -= align
    return best_t


def _vmem_bytes(tm, tn, feat_dim, num_classes, itemsize=4):
    per_set = (tm * feat_dim + tm * num_classes
               + feat_dim * tn + num_classes * tn + tm * tn) * itemsize
    return 2 * per_set  # double-buffered pipeline


def randomized_multilinear_map(f, g, Rf, Rg, *, tm=None, tn=None,
                               vmem_limit_bytes=48 * 1024 * 1024):
    B, feat_dim = f.shape
    B2, num_classes = g.shape
    assert B == B2
    map_dim = Rf.shape[1]
    assert Rf.shape == (feat_dim, map_dim)
    assert Rg.shape == (num_classes, map_dim)

    # --- Tile selection -----------------------------------------------------
    tm_cap, tn_cap = 256, 1024
    if tm is None:
        tm = _pick_tile(B, 8, tm_cap)
    if tn is None:
        tn = _pick_tile(map_dim, 128, tn_cap)
        # Shrink tiles (map dim first, then batch) if the double-buffered
        # working set would exceed the VMEM budget.
        budget = int(0.8 * vmem_limit_bytes)
        while _vmem_bytes(tm, tn, feat_dim, num_classes) > budget:
            if tn > 128:
                tn = _pick_tile(map_dim, 128, tn - 128)
            elif tm > 8:
                tm = _pick_tile(B, 8, tm - 8)
            else:
                break

    # --- Padding to tile multiples (sliced back at the end) ------------------
    Bp = _round_up(B, tm)
    Np = _round_up(map_dim, tn)
    if Bp != B:
        f = jnp.pad(f, ((0, Bp - B), (0, 0)))
        g = jnp.pad(g, ((0, Bp - B), (0, 0)))
    if Np != map_dim:
        Rf = jnp.pad(Rf, ((0, 0), (0, Np - map_dim)))
        Rg = jnp.pad(Rg, ((0, 0), (0, Np - map_dim)))

    inv_scaler = 1.0 / math.sqrt(float(map_dim))
    kernel = functools.partial(_rmlm_kernel, inv_scaler=inv_scaler)

    # Grid: map tiles OUTER, batch tiles INNER -> Rf/Rg block index constant
    # across the inner axis (weights DMA'd once per map tile).
    grid = (Np // tn, Bp // tm)

    flops = 2 * Bp * Np * (feat_dim + num_classes) + 2 * Bp * Np
    bytes_accessed = 4 * (Bp * feat_dim + Bp * num_classes
                          + feat_dim * Np + num_classes * Np + Bp * Np)
    cost = pl.CostEstimate(flops=flops, transcendentals=0,
                           bytes_accessed=bytes_accessed)

    out = pl.pallas_call(
        kernel,
        out_shape=jax.ShapeDtypeStruct((Bp, Np), jnp.float32),
        grid_spec=pltpu.PrefetchScalarGridSpec(
            num_scalar_prefetch=0,
            grid=grid,
            in_specs=[
                pl.BlockSpec((tm, feat_dim), lambda j, i: (i, 0)),      # f
                pl.BlockSpec((tm, num_classes), lambda j, i: (i, 0)),   # g
                pl.BlockSpec((feat_dim, tn), lambda j, i: (0, j)),      # Rf
                pl.BlockSpec((num_classes, tn), lambda j, i: (0, j)),   # Rg
            ],
            out_specs=pl.BlockSpec((tm, tn), lambda j, i: (i, j)),
        ),
        compiler_params=pltpu.CompilerParams(
            dimension_semantics=("parallel", "parallel"),
            vmem_limit_bytes=vmem_limit_bytes,
        ),
        cost_estimate=cost,
    )(f, g, Rf, Rg)

    if Bp != B or Np != map_dim:
        out = out[:B, :map_dim]
    return out


if __name__ == "__main__":
    # Small shapes consistent with the module's forward. B is not a multiple
    # of 8 (exercises batch padding) and map_dim forces a >1 map-tile grid
    # under the auto-tiler (tn=768 -> 2 map tiles, zero map padding).
    B = 20
    feat_dim = 48
    num_classes = 26
    map_dim = 1536

    key = jax.random.PRNGKey(0)
    k_rf, k_rg, k_f, k_g = jax.random.split(key, 4)

    # Deterministic "randn" buffers (mirrors torch.randn in __init__).
    Rf = jax.random.normal(k_rf, (feat_dim, map_dim), dtype=jnp.float32)
    Rg = jax.random.normal(k_rg, (num_classes, map_dim), dtype=jnp.float32)

    f = jax.random.normal(k_f, (B, feat_dim), dtype=jnp.float32)
    g = jax.random.normal(k_g, (B, num_classes), dtype=jnp.float32)

    out = randomized_multilinear_map(f, g, Rf, Rg)
    out = jax.block_until_ready(out)

    # Pure-JAX reference check.
    ref = (f @ Rf) * (g @ Rg) / math.sqrt(float(map_dim))
    assert out.shape == (B, map_dim)
    assert jnp.allclose(out, ref, atol=1e-4, rtol=1e-4)

    print("KERNEL_OK")
</pallas_src>

<mosaic_0001>
module attributes {stable_mosaic.version = 11 : i64} {
  func.func @_rmlm_kernel(%arg0: i32, %arg1: i32, %arg2: memref<24x48xf32, #tpu.memory_space<vmem>>, %arg3: memref<24x26xf32, #tpu.memory_space<vmem>>, %arg4: memref<48x768xf32, #tpu.memory_space<vmem>>, %arg5: memref<26x768xf32, #tpu.memory_space<vmem>>, %arg6: memref<24x768xf32, #tpu.memory_space<vmem>>) attributes {dimension_semantics = [#tpu.dimension_semantics<parallel>, #tpu.dimension_semantics<parallel>], iteration_bounds = array<i64: 2, 1>, scalar_prefetch = 0 : i64, scratch_operands = 0 : i64, tpu.core_type = #tpu.core_type<tc>, window_params = [{transform_indices = @transform_0, window_bounds = array<i64: 24, 48>}, {transform_indices = @transform_1, window_bounds = array<i64: 24, 26>}, {transform_indices = @transform_2, window_bounds = array<i64: 48, 768>}, {transform_indices = @transform_3, window_bounds = array<i64: 26, 768>}, {transform_indices = @transform_4, window_bounds = array<i64: 24, 768>}]} {
    %c0 = arith.constant 0 : index
    %c0_0 = arith.constant 0 : index
    %0 = vector.load %arg2[%c0, %c0_0] : memref<24x48xf32, #tpu.memory_space<vmem>>, vector<24x48xf32>
    %c0_1 = arith.constant 0 : index
    %c0_2 = arith.constant 0 : index
    %1 = vector.load %arg4[%c0_1, %c0_2] : memref<48x768xf32, #tpu.memory_space<vmem>>, vector<48x768xf32>
    %cst = arith.constant dense<0.000000e+00> : vector<24x768xf32>
    %2 = tpu.matmul %0, %1, %cst {dimension_numbers = #tpu.dot_dimension_numbers<[1], [0], [0], [1], [0, 0, 1, 1], [], []>} : vector<24x48xf32>, vector<48x768xf32>, vector<24x768xf32> -> vector<24x768xf32>
    %c0_3 = arith.constant 0 : index
    %c0_4 = arith.constant 0 : index
    %3 = vector.load %arg3[%c0_3, %c0_4] : memref<24x26xf32, #tpu.memory_space<vmem>>, vector<24x26xf32>
    %c0_5 = arith.constant 0 : index
    %c0_6 = arith.constant 0 : index
    %4 = vector.load %arg5[%c0_5, %c0_6] : memref<26x768xf32, #tpu.memory_space<vmem>>, vector<26x768xf32>
    %cst_7 = arith.constant dense<0.000000e+00> : vector<24x768xf32>
    %5 = tpu.matmul %3, %4, %cst_7 {dimension_numbers = #tpu.dot_dimension_numbers<[1], [0], [0], [1], [0, 0, 1, 1], [], []>} : vector<24x26xf32>, vector<26x768xf32>, vector<24x768xf32> -> vector<24x768xf32>
    %6 = arith.mulf %2, %5 : vector<24x768xf32>
    %cst_8 = arith.constant 0.0255155191 : f32
    %7 = vector.broadcast %cst_8 : f32 to vector<24x768xf32>
    %8 = arith.mulf %6, %7 : vector<24x768xf32>
    %c0_9 = arith.constant 0 : index
    %c0_10 = arith.constant 0 : index
    %9 = vector.load %arg6[%c0_9, %c0_10] : memref<24x768xf32, #tpu.memory_space<vmem>>, vector<24x768xf32>
    tpu.vector_store %arg6[%c0_9, %c0_10], %8 {strides = array<i32>} : memref<24x768xf32, #tpu.memory_space<vmem>>, vector<24x768xf32>,
    return
  }
  func.func @transform_0(%arg0: i32, %arg1: i32) -> (i32, i32) {
    %c0_i32 = arith.constant 0 : i32
    %c0_i32_0 = arith.constant 0 : i32
    return %arg1, %c0_i32 : i32, i32
  }
  func.func @transform_1(%arg0: i32, %arg1: i32) -> (i32, i32) {
    %c0_i32 = arith.constant 0 : i32
    %c0_i32_0 = arith.constant 0 : i32
    return %arg1, %c0_i32 : i32, i32
  }
  func.func @transform_2(%arg0: i32, %arg1: i32) -> (i32, i32) {
    %c0_i32 = arith.constant 0 : i32
    %c0_i32_0 = arith.constant 0 : i32
    return %c0_i32, %arg0 : i32, i32
  }
  func.func @transform_3(%arg0: i32, %arg1: i32) -> (i32, i32) {
    %c0_i32 = arith.constant 0 : i32
    %c0_i32_0 = arith.constant 0 : i32
    return %c0_i32, %arg0 : i32, i32
  }
  func.func @transform_4(%arg0: i32, %arg1: i32) -> (i32, i32) {
    %c0_i32 = arith.constant 0 : i32
    return %arg1, %arg0 : i32, i32
  }
}

</mosaic_0001>

<llo_original>
// kernel: tpu_custom_call.1
$region0: #{tpu_custom_call.1}
  #allocation0 [shape = 'u32[]', space=smem, size = 0x4, offset = 0x4, fixed_abs, tag = 'smem constant byte address 0x4 - core index']
  #allocation1 [shape = 'u32[144,128]{1,0:T(1,128)}', space=vmem, size = 0x12000, scoped, tag = 'internal scratch']
  %s0 = inlined_call_operand.hbm [shape: f32[24,48], index: 0, kind: input, shape index: {}]
  %s1 = inlined_call_operand.hbm [shape: f32[24,26], index: 1, kind: input, shape index: {}]
  %s2 = inlined_call_operand.hbm [shape: f32[48,1536], index: 2, kind: input, shape index: {}]
  %s3 = inlined_call_operand.hbm [shape: f32[26,1536], index: 3, kind: input, shape index: {}]
  %s4 = inlined_call_operand.hbm [shape: f32[24,1536], index: 4, kind: output, shape index: {}]
  %s5 = sld [smem:[#allocation0]]
  $region65: #{tpu_custom_call.1} parent=0
    _
  %s7 = ssub.s32 1, %s5
  %s8 = scalar_select 0, %s7, %s5
  $region1: #{tpu_custom_call.1} parent=0
    #allocation2 [shape = 'u8[12288]{0}', space=vmem, size = 0x3000, scoped, tag = 'input window, operand 0, single buffered']
    #allocation3 [shape = 's32[2]{0}', space=sflag, size = 0x8, scoped, tag = 'scoped memory for tpu_custom_call.1']
    #allocation4 [shape = 's32[2]{0}', space=sflag, size = 0x8, scoped, tag = 'scoped memory for tpu_custom_call.1']
    #allocation5 [shape = 'u8[12288]{0}', space=vmem, size = 0x3000, scoped, tag = 'input window, operand 1, single buffered']
    #allocation6 [shape = 's32[1]{0}', space=sflag, size = 0x4, scoped, tag = 'scoped memory for tpu_custom_call.1']
    #allocation7 [shape = 'u8[294912]{0}', space=vmem, size = 0x48000, scoped, tag = 'input window, operand 2']
    #allocation8 [shape = 'u8[196608]{0}', space=vmem, size = 0x30000, scoped, tag = 'input window, operand 3']
    #allocation9 [shape = 'u8[147456]{0}', space=vmem, size = 0x24000, scoped, tag = 'output window, operand 0']
    %9 = vsyncpa [#allocation3], 0
    %10 = vsyncpa [#allocation6], 0
    %11 = vsyncpa [#allocation4], 0
    %s12 = scalar_lea.sflag [#allocation4], 1
    %13 = vsyncpa %s12, 0
    loop: start=0, step=1, limit=4
    $region2: #{tpu_custom_call.1} parent=1 // loop_pre_header
      _
    $region3: #{tpu_custom_call.1} parent=1 // loop_header
      %s15 = sphi 0, %s19
      %p16 = scmp.ge.s32.totalorder %s15, 4
      %s22 = sphi 0, %s34
      %s23 = sphi 0, %s30
      %s24 = sphi 0, %s22
      %s25 = sphi 0, %s23
      %s26 = sphi 0, %s24
      %s27 = sphi 0, %s25
      %s37 = sphi 0, %s39
      %s40 = sphi 0, %s37
      %s41 = sphi 0, %s40
      %s57 = sphi 0, %s41
      %s63 = sphi 0, %s65
      %s66 = sphi 0, %s63
      %s67 = sphi 0, %s66
      %s83 = sphi 0, %s67
      %s89 = sphi 0, %s91
      %s92 = sphi 0, %s89
      %s93 = sphi 0, %s92
      %s109 = sphi 0, %s93
      %s115 = sphi 0, %s117
      %s118 = sphi 0, %s115
      %s119 = sphi 0, %s118
      %s135 = sphi 0, %s119
      %s143 = sphi 0, %s145
      %s146 = sphi 0, %s143
      %s147 = sphi 0, %s146
      %s163 = sphi 0, %s147
    $region4: #{tpu_custom_call.1} parent=1 // loop_header_branch
      %18 = sbr.rel (%p16) target = $region8
    $region5: #{tpu_custom_call.1} parent=1 // loop_body
      %s20 = ssub.s32 %s15, 1
      %s21 = ssub.s32 %s15, 2
      %s28 = sadd.s32 1, %s23
      %p29 = scmp.ge.s32.totalorder %s28, 1
      %s30 = scalar_select %p29, 0, %s28
      %s31 = sadd.s32 1, %s22
      %s32 = scalar_select %p29, %s31, %s22
      %p33 = scmp.ge.s32.totalorder %s32, 2
      %s34 = scalar_select %p33, 0, %s32
      %s35 = ssub.s32 %s23, %s30
      %p36 = scmp.eq.s32.totalorder %s35, 0
      %s38 = sadd.s32 %s37, 1
      %s39 = scalar_select %p36, %s37, %s38
      %p42 = pneg %p36
      %p43 = scmp.eq.s32.totalorder %s15, 1
      %p44 = por %p42, %p43
      %p45 = scmp.ne.s32.totalorder %s37, %s40
      %p46 = scmp.eq.s32.totalorder %s15, 0
      %p47 = por %p45, %p46
      %p48 = scmp.ne.s32.totalorder %s37, %s40
      %p49 = scmp.eq.s32.totalorder %s20, 1
      %p50 = por %p48, %p49
      %p51 = scmp.ne.s32.totalorder %s40, %s41
      %p52 = scmp.eq.s32.totalorder %s20, 0
      %p53 = por %p51, %p52
      %p54 = scmp.ne.s32.totalorder %s40, %s41
      %p55 = scmp.eq.s32.totalorder %s21, 1
      %p56 = por %p54, %p55
      %p58 = scmp.ne.s32.totalorder %s41, %s57
      %p59 = scmp.eq.s32.totalorder %s21, 0
      %p60 = por %p58, %p59
      %s61 = ssub.s32 %s23, %s30
      %p62 = scmp.eq.s32.totalorder %s61, 0
      %s64 = sadd.s32 %s63, 1
      %s65 = scalar_select %p62, %s63, %s64
      %p68 = pneg %p62
      %p69 = scmp.eq.s32.totalorder %s15, 1
      %p70 = por %p68, %p69
      %p71 = scmp.ne.s32.totalorder %s63, %s66
      %p72 = scmp.eq.s32.totalorder %s15, 0
      %p73 = por %p71, %p72
      %p74 = scmp.ne.s32.totalorder %s63, %s66
      %p75 = scmp.eq.s32.totalorder %s20, 1
      %p76 = por %p74, %p75
      %p77 = scmp.ne.s32.totalorder %s66, %s67
      %p78 = scmp.eq.s32.totalorder %s20, 0
      %p79 = por %p77, %p78
      %p80 = scmp.ne.s32.totalorder %s66, %s67
      %p81 = scmp.eq.s32.totalorder %s21, 1
      %p82 = por %p80, %p81
      %p84 = scmp.ne.s32.totalorder %s67, %s83
      %p85 = scmp.eq.s32.totalorder %s21, 0
      %p86 = por %p84, %p85
      %s87 = ssub.s32 %s22, %s34
      %p88 = scmp.eq.s32.totalorder %s87, 0
      %s90 = sadd.s32 %s89, 1
      %s91 = scalar_select %p88, %s89, %s90
      %p94 = pneg %p88
      %p95 = scmp.eq.s32.totalorder %s15, 1
      %p96 = por %p94, %p95
      %p97 = scmp.ne.s32.totalorder %s89, %s92
      %p98 = scmp.eq.s32.totalorder %s15, 0
      %p99 = por %p97, %p98
      %p100 = scmp.ne.s32.totalorder %s89, %s92
      %p101 = scmp.eq.s32.totalorder %s20, 1
      %p102 = por %p100, %p101
      %p103 = scmp.ne.s32.totalorder %s92, %s93
      %p104 = scmp.eq.s32.totalorder %s20, 0
      %p105 = por %p103, %p104
      %p106 = scmp.ne.s32.totalorder %s92, %s93
      %p107 = scmp.eq.s32.totalorder %s21, 1
      %p108 = por %p106, %p107
      %p110 = scmp.ne.s32.totalorder %s93, %s109
      %p111 = scmp.eq.s32.totalorder %s21, 0
      %p112 = por %p110, %p111
      %s113 = ssub.s32 %s22, %s34
      %p114 = scmp.eq.s32.totalorder %s113, 0
      %s116 = sadd.s32 %s115, 1
      %s117 = scalar_select %p114, %s115, %s116
      %p120 = pneg %p114
      %p121 = scmp.eq.s32.totalorder %s15, 1
      %p122 = por %p120, %p121
      %p123 = scmp.ne.s32.totalorder %s115, %s118
      %p124 = scmp.eq.s32.totalorder %s15, 0
      %p125 = por %p123, %p124
      %p126 = scmp.ne.s32.totalorder %s115, %s118
      %p127 = scmp.eq.s32.totalorder %s20, 1
      %p128 = por %p126, %p127
      %p129 = scmp.ne.s32.totalorder %s118, %s119
      %p130 = scmp.eq.s32.totalorder %s20, 0
      %p131 = por %p129, %p130
      %p132 = scmp.ne.s32.totalorder %s118, %s119
      %p133 = scmp.eq.s32.totalorder %s21, 1
      %p134 = por %p132, %p133
      %p136 = scmp.ne.s32.totalorder %s119, %s135
      %p137 = scmp.eq.s32.totalorder %s21, 0
      %p138 = por %p136, %p137
      %s139 = ssub.s32 %s23, %s30
      %s140 = ssub.s32 %s22, %s34
      %s141 = sor.u32 %s139, %s140
      %p142 = scmp.eq.s32.totalorder %s141, 0
      %s144 = sadd.s32 %s143, 1
      %s145 = scalar_select %p142, %s143, %s144
      %p148 = pneg %p142
      %p149 = scmp.eq.s32.totalorder %s15, 1
      %p150 = por %p148, %p149
      %p151 = scmp.ne.s32.totalorder %s143, %s146
      %p152 = scmp.eq.s32.totalorder %s15, 0
      %p153 = por %p151, %p152
      %p154 = scmp.ne.s32.totalorder %s143, %s146
      %p155 = scmp.eq.s32.totalorder %s20, 1
      %p156 = por %p154, %p155
      %p157 = scmp.ne.s32.totalorder %s146, %s147
      %p158 = scmp.eq.s32.totalorder %s20, 0
      %p159 = por %p157, %p158
      %p160 = scmp.ne.s32.totalorder %s146, %s147
      %p161 = scmp.eq.s32.totalorder %s21, 1
      %p162 = por %p160, %p161
      %p164 = scmp.ne.s32.totalorder %s147, %s163
      %p165 = scmp.eq.s32.totalorder %s21, 0
      %p166 = por %p164, %p165
      %p167 = scmp.le.s32.totalorder 1, %s15
      %p168 = scmp.lt.s32.totalorder %s15, 3
      %p169 = pnand %p167, %p168
      %p170 = pneg %p169
      // Predicated region
      $region9: #{tpu_custom_call.1} parent=5 // pred_check
        _
      $region10: #{tpu_custom_call.1} parent=5 // pred_check_branch
        %172 = sbr.rel (%p169) target = $region12
      $region11: #{tpu_custom_call.1} parent=5 // pred_region
        %s173 = ssub.s32 %s15, 1
        // Predicated region
        $region13: #{tpu_custom_call.1} parent=11 // pred_check
          %p174 = pneg %p53
        $region14: #{tpu_custom_call.1} parent=11 // pred_check_branch
          %176 = sbr.rel (%p174) target = $region16
        $region15: #{tpu_custom_call.1} parent=11 // pred_region
          %s177 = smul.u32 3, %s25
          %s179 = ssub.s32 384, 384
          %180 = vsyncadd [#allocation3], %s179
          %s181 = smul.addr %s177, 128
          %s182 = scalar_lea.hbm %s0, %s181
          %s183 = sshll.u32 [#allocation2], 4
          %s184 = int_to_ptr.vmem [resolvable:$true] %s183
          %189 = dma.hbm_to_vmem [thread:$0]  %s182, 384, %s184, [#allocation3], 128, 128, 8
        $region16: #{tpu_custom_call.1} parent=11 // pred_fallthru
          _
        // Predicated region
        $region17: #{tpu_custom_call.1} parent=11 // pred_check
          %p190 = pneg %p79
        $region18: #{tpu_custom_call.1} parent=11 // pred_check_branch
          %192 = sbr.rel (%p190) target = $region20
        $region19: #{tpu_custom_call.1} parent=11 // pred_region
          %s193 = smul.u32 3, %s25
          %s195 = ssub.s32 384, 384
          %196 = vsyncadd [#allocation6], %s195
          %s197 = smul.addr %s193, 128
          %s198 = scalar_lea.hbm %s1, %s197
          %s199 = sshll.u32 [#allocation5], 4
          %s200 = int_to_ptr.vmem [resolvable:$true] %s199
          %205 = dma.hbm_to_vmem [thread:$0]  %s198, 384, %s200, [#allocation6], 128, 128, 8
        $region20: #{tpu_custom_call.1} parent=11 // pred_fallthru
          _
      $region12: #{tpu_custom_call.1} parent=5 // pred_fallthru
        _
      %p206 = scmp.lt.s32.totalorder %s15, 2
      // Predicated region
      $region21: #{tpu_custom_call.1} parent=5 // pred_check
        %p207 = pneg %p206
      $region22: #{tpu_custom_call.1} parent=5 // pred_check_branch
        %209 = sbr.rel (%p207) target = $region24
      $region23: #{tpu_custom_call.1} parent=5 // pred_region
        // Predicated region
        $region25: #{tpu_custom_call.1} parent=23 // pred_check
          %p210 = pneg %p99
        $region26: #{tpu_custom_call.1} parent=23 // pred_check_branch
          %212 = sbr.rel (%p210) target = $region28
        $region27: #{tpu_custom_call.1} parent=23 // pred_region
          %s213 = sand.u32 %s15, 1
          %s214 = scalar_lea.sflag [#allocation3], %s213
          %s215 = sand.u32 %s89, 1
          %s216 = smul.addr %s215, 288
          %s217 = scalar_lea.vmem [#allocation7], %s216
          %s218 = smul.u32 6, %s22
          %s220 = ssub.s32 4608, 4608
          %221 = vsyncadd %s214, %s220
          %s222 = smul.addr %s218, 128
          %s223 = scalar_lea.hbm %s2, %s222
          %s224 = sshll.u32 %s217, 4
          %s225 = int_to_ptr.vmem [resolvable:$true] %s224
          %230 = dma.hbm_to_vmem [thread:$0]  %s223, 4608, %s225, %s214, 1536, 768, 48
        $region28: #{tpu_custom_call.1} parent=23 // pred_fallthru
          _
        // Predicated region
        $region29: #{tpu_custom_call.1} parent=23 // pred_check
          %p231 = pneg %p125
        $region30: #{tpu_custom_call.1} parent=23 // pred_check_branch
          %233 = sbr.rel (%p231) target = $region32
        $region31: #{tpu_custom_call.1} parent=23 // pred_region
          %s234 = sand.u32 %s15, 1
          %s235 = scalar_lea.sflag [#allocation3], %s234
          %s236 = sand.u32 %s115, 1
          %s237 = smul.addr %s236, 192
          %s238 = scalar_lea.vmem [#allocation8], %s237
          %s239 = smul.u32 6, %s22
          %s241 = ssub.s32 3072, 3072
          %242 = vsyncadd %s235, %s241
          %s243 = smul.addr %s239, 128
          %s244 = scalar_lea.hbm %s3, %s243
          %s245 = sshll.u32 %s238, 4
          %s246 = int_to_ptr.vmem [resolvable:$true] %s245
          %251 = dma.hbm_to_vmem [thread:$0]  %s244, 3072, %s246, %s235, 1536, 768, 48
        $region32: #{tpu_custom_call.1} parent=23 // pred_fallthru
          _
      $region24: #{tpu_custom_call.1} parent=5 // pred_fallthru
        _
      %p252 = scmp.le.s32.totalorder 1, %s15
      %p253 = scmp.lt.s32.totalorder %s15, 3
      %p254 = pnand %p252, %p253
      %p255 = pneg %p254
      // Predicated region
      $region33: #{tpu_custom_call.1} parent=5 // pred_check
        _
      $region34: #{tpu_custom_call.1} parent=5 // pred_check_branch
        %257 = sbr.rel (%p254) target = $region36
      $region35: #{tpu_custom_call.1} parent=5 // pred_region
        %s258 = ssub.s32 %s15, 1
        // Predicated region
        $region37: #{tpu_custom_call.1} parent=35 // pred_check
          %p259 = pneg %p53
        $region38: #{tpu_custom_call.1} parent=35 // pred_check_branch
          %261 = sbr.rel (%p259) target = $region40
        $region39: #{tpu_custom_call.1} parent=35 // pred_region
          %262 = dma.done [#allocation3], 384
        $region40: #{tpu_custom_call.1} parent=35 // pred_fallthru
          _
        // Predicated region
        $region41: #{tpu_custom_call.1} parent=35 // pred_check
          %p263 = pneg %p79
        $region42: #{tpu_custom_call.1} parent=35 // pred_check_branch
          %265 = sbr.rel (%p263) target = $region44
        $region43: #{tpu_custom_call.1} parent=35 // pred_region
          %266 = dma.done [#allocation6], 384
        $region44: #{tpu_custom_call.1} parent=35 // pred_fallthru
          _
        %s267 = sand.u32 %s20, 1
        %s268 = scalar_lea.sflag [#allocation3], %s267
        %s269 = sand.u32 %s92, 1
        %s270 = smul.addr %s269, 288
        %s271 = scalar_lea.vmem [#allocation7], %s270
        // Predicated region
        $region45: #{tpu_custom_call.1} parent=35 // pred_check
          %p272 = pneg %p105
        $region46: #{tpu_custom_call.1} parent=35 // pred_check_branch
          %274 = sbr.rel (%p272) target = $region48
        $region47: #{tpu_custom_call.1} parent=35 // pred_region
          %275 = dma.done %s268, 4608
        $region48: #{tpu_custom_call.1} parent=35 // pred_fallthru
          _
        %s276 = sand.u32 %s20, 1
        %s277 = scalar_lea.sflag [#allocation3], %s276
        %s278 = sand.u32 %s118, 1
        %s279 = smul.addr %s278, 192
        %s280 = scalar_lea.vmem [#allocation8], %s279
        // Predicated region
        $region49: #{tpu_custom_call.1} parent=35 // pred_check
          %p281 = pneg %p131
        $region50: #{tpu_custom_call.1} parent=35 // pred_check_branch
          %283 = sbr.rel (%p281) target = $region52
        $region51: #{tpu_custom_call.1} parent=35 // pred_region
          %284 = dma.done %s277, 3072
        $region52: #{tpu_custom_call.1} parent=35 // pred_fallthru
          _
        %p285 = pneg %p53
        %p286 = pneg %p50
        %p287 = pneg %p79
        %p288 = pneg %p76
        %s289 = sand.u32 %s20, 1
        %s290 = scalar_lea.sflag [#allocation3], %s289
        %s291 = sand.u32 %s92, 1
        %s292 = smul.addr %s291, 288
        %s293 = scalar_lea.vmem [#allocation7], %s292
        %p294 = pneg %p105
        %p295 = pneg %p102
        %s296 = sand.u32 %s20, 1
        %s297 = scalar_lea.sflag [#allocation3], %s296
        %s298 = sand.u32 %s118, 1
        %s299 = smul.addr %s298, 192
        %s300 = scalar_lea.vmem [#allocation8], %s299
        %p301 = pneg %p131
        %p302 = pneg %p128
        %p303 = pneg %p159
        %p304 = pneg %p156
        %s305 = sand.u32 %s146, 1
        %s306 = scalar_lea.sflag [#allocation4], %s305
        %s307 = sand.u32 %s146, 1
        %s308 = smul.addr %s307, 144
        %s309 = scalar_lea.vmem [#allocation9], %s308
        %s310 = smul.u32 3, %s25
        %s311 = smul.u32 3, %s25
        %s312 = smul.u32 6, %s24
        %s313 = smul.u32 6, %s24
        %s314 = smul.u32 3, %s25
        %s315 = smul.u32 6, %s24
        %v316 = vld [vmem:[#allocation2] sm:$0xff]
        %v317 = vld [vmem:[#allocation2 + $0x8] sm:$0xff]
        %v318 = vld [vmem:[#allocation2 + $0x10] sm:$0xff]
        %v319 = vld [vmem:[%s271] sm:$0xff]
        %v320 = vld [vmem:[%s271 + $0x8] sm:$0xff]
        %v321 = vld [vmem:[%s271 + $0x10] sm:$0xff]
        %v322 = vld [vmem:[%s271 + $0x18] sm:$0xff]
        %v323 = vld [vmem:[%s271 + $0x20] sm:$0xff]
        %v324 = vld [vmem:[%s271 + $0x28] sm:$0xff]
        %v325 = vld [vmem:[%s271 + $0x30] sm:$0xff]
        %v326 = vld [vmem:[%s271 + $0x38] sm:$0xff]
        %v327 = vld [vmem:[%s271 + $0x40] sm:$0xff]
        %v328 = vld [vmem:[%s271 + $0x48] sm:$0xff]
        %v329 = vld [vmem:[%s271 + $0x50] sm:$0xff]
        %v330 = vld [vmem:[%s271 + $0x58] sm:$0xff]
        %v331 = vld [vmem:[%s271 + $0x60] sm:$0xff]
        %v332 = vld [vmem:[%s271 + $0x68] sm:$0xff]
        %v333 = vld [vmem:[%s271 + $0x70] sm:$0xff]
        %v334 = vld [vmem:[%s271 + $0x78] sm:$0xff]
        %v335 = vld [vmem:[%s271 + $0x80] sm:$0xff]
        %v336 = vld [vmem:[%s271 + $0x88] sm:$0xff]
        %v337 = vld [vmem:[%s271 + $0x90] sm:$0xff]
        %v338 = vld [vmem:[%s271 + $0x98] sm:$0xff]
        %v339 = vld [vmem:[%s271 + $0xa0] sm:$0xff]
        %v340 = vld [vmem:[%s271 + $0xa8] sm:$0xff]
        %v341 = vld [vmem:[%s271 + $0xb0] sm:$0xff]
        %v342 = vld [vmem:[%s271 + $0xb8] sm:$0xff]
        %v343 = vld [vmem:[%s271 + $0xc0] sm:$0xff]
        %v344 = vld [vmem:[%s271 + $0xc8] sm:$0xff]
        %v345 = vld [vmem:[%s271 + $0xd0] sm:$0xff]
        %v346 = vld [vmem:[%s271 + $0xd8] sm:$0xff]
        %v347 = vld [vmem:[%s271 + $0xe0] sm:$0xff]
        %v348 = vld [vmem:[%s271 + $0xe8] sm:$0xff]
        %v349 = vld [vmem:[%s271 + $0xf0] sm:$0xff]
        %v350 = vld [vmem:[%s271 + $0xf8] sm:$0xff]
        %v351 = vld [vmem:[%s271 + $0x100] sm:$0xff]
        %v352 = vld [vmem:[%s271 + $0x108] sm:$0xff]
        %v353 = vld [vmem:[%s271 + $0x110] sm:$0xff]
        %v354 = vld [vmem:[%s271 + $0x118] sm:$0xff]
        %vm355 = vcmask 392192
        %v357 = vsel %vm355, %v316, 0
        %v360 = vsel %vm355, %v317, 0
        %v363 = vsel %vm355, %v318, 0
        %365 = vmatprep.subr.mxu0 %v320
        %366 = vmatpush1.msra.mxu0 %v319
        %367 = vmatprep.subr.mxu0 %v326
        %368 = vmatpush1.msra.mxu0 %v325
        %369 = vmatprep.subr.mxu0 %v332
        %370 = vmatpush1.msra.mxu0 %v331
        %371 = vmatprep.subr.mxu0 %v338
        %372 = vmatpush1.msra.mxu0 %v337
        %373 = vmatprep.subr.mxu0 %v344
        %374 = vmatpush1.msra.mxu0 %v343
        %375 = vmatprep.subr.mxu0 %v350
        %376 = vmatpush1.msra.mxu0 %v349
        %377 = vmatprep.subr.mxu0 0.0
        %378 = vmatpush1.msra.mxu0 0.0
        %379 = vmatprep.subr.mxu0 0.0
        %380 = vmatpush1.msra.mxu0 0.0
        %381 = vmatprep.subr.mxu0 0.0
        %382 = vmatpush1.msra.mxu0 0.0
        %383 = vmatprep.subr.mxu0 0.0
        %384 = vmatpush1.msra.mxu0 0.0
        %385 = vmatprep.subr.mxu0 0.0
        %386 = vmatpush1.msra.mxu0 0.0
        %387 = vmatprep.subr.mxu0 0.0
        %388 = vmatpush1.msra.mxu0 0.0
        %389 = vmatprep.subr.mxu0 0.0
        %390 = vmatpush1.msra.mxu0 0.0
        %391 = vmatprep.subr.mxu0 0.0
        %392 = vmatpush1.msra.mxu0 0.0
        %393 = vmatprep.subr.mxu0 0.0
        %394 = vmatpush1.msra.mxu0 0.0
        %395 = vmatprep.subr.mxu0 0.0
        %396 = vmatpush1.msra.mxu0 0.0
        %397 = vmatprep.subr.mxu0 0.0
        %398 = vmatpush1.msra.mxu0 0.0
        %399 = vmatprep.subr.mxu0 0.0
        %400 = vmatpush1.msra.mxu0 0.0
        %401 = vmatprep.subr.mxu0 0.0
        %402 = vmatpush1.msra.mxu0 0.0
        %403 = vmatprep.subr.mxu0 0.0
        %404 = vmatpush1.msra.mxu0 0.0
        %405 = vmatprep.subr.mxu0 0.0
        %406 = vmatpush1.msra.mxu0 0.0
        %407 = vmatprep.subr.mxu0 0.0
        %408 = vmatpush1.msra.mxu0 0.0
        %409 = vmatprep.subr.mxu0 0.0
        %410 = vmatpush1.msra.mxu0 0.0
        %411 = vmatprep.subr.mxu0 0.0
        %412 = vmatpush1.msra.mxu0 0.0
        %413 = vmatprep.subr.mxu0 0.0
        %414 = vmatpush1.msra.mxu0 0.0
        %415 = vmatprep.subr.mxu0 0.0
        %416 = vmatpush1.msra.mxu0 0.0
        %417 = vmatprep.subr.mxu0 0.0
        %418 = vmatpush1.msra.mxu0 0.0
        %419 = vmatprep.subr.mxu0 0.0
        %420 = vmatpush1.msra.mxu0 0.0
        %421 = vmatprep.subr.mxu0 0.0
        %422 = vmatpush1.msra.mxu0 0.0
        %423 = vmatprep.subr.mxu0 0.0
        %424 = vmatpush1.msra.mxu0 0.0
        %425 = vmatprep.subr.mxu0 0.0
        %426 = vmatpush1.msra.mxu0 0.0
        %427 = vmatprep.subr.mxu0 0.0
        %428 = vmatpush1.msra.mxu0 0.0
        %429 = vmatprep.mubr.f32.mxu0 0.0
        %430 = vmatmul.mubr.f32.gmra.mrb[0].mxu0 %v357
        %v431 = vpop.f32.mrb[0].mxu0
        %v432 = vadd.f32 0.0, %v431
        %v433 = vpop.f32.mrb[0].mxu0
        %v434 = vadd.f32 0.0, %v433
        %435 = vmatprep.mubr.f32.mxu0 0.0
        %436 = vmatmul.mubr.f32.gmra.mrb[0].mxu0 %v360
        %v437 = vpop.f32.mrb[0].mxu0
        %v438 = vadd.f32 0.0, %v437
        %v439 = vpop.f32.mrb[0].mxu0
        %v440 = vadd.f32 0.0, %v439
        %441 = vmatprep.mubr.f32.mxu0 0.0
        %442 = vmatmul.mubr.f32.gmra.mrb[0].mxu0 %v363
        %v443 = vpop.f32.mrb[0].mxu0
        %v444 = vadd.f32 0.0, %v443
        %v445 = vpop.f32.mrb[0].mxu0
        %v446 = vadd.f32 0.0, %v445
        %447 = vdwg.mxu0
        %448 = vmatprep.subr.mxu0 %v322
        %449 = vmatpush1.msra.mxu0 %v321
        %450 = vmatprep.subr.mxu0 %v328
        %451 = vmatpush1.msra.mxu0 %v327
        %452 = vmatprep.subr.mxu0 %v334
        %453 = vmatpush1.msra.mxu0 %v333
        %454 = vmatprep.subr.mxu0 %v340
        %455 = vmatpush1.msra.mxu0 %v339
        %456 = vmatprep.subr.mxu0 %v346
        %457 = vmatpush1.msra.mxu0 %v345
        %458 = vmatprep.subr.mxu0 %v352
        %459 = vmatpush1.msra.mxu0 %v351
        %460 = vmatprep.subr.mxu0 0.0
        %461 = vmatpush1.msra.mxu0 0.0
        %462 = vmatprep.subr.mxu0 0.0
        %463 = vmatpush1.msra.mxu0 0.0
        %464 = vmatprep.subr.mxu0 0.0
        %465 = vmatpush1.msra.mxu0 0.0
        %466 = vmatprep.subr.mxu0 0.0
        %467 = vmatpush1.msra.mxu0 0.0
        %468 = vmatprep.subr.mxu0 0.0
        %469 = vmatpush1.msra.mxu0 0.0
        %470 = vmatprep.subr.mxu0 0.0
        %471 = vmatpush1.msra.mxu0 0.0
        %472 = vmatprep.subr.mxu0 0.0
        %473 = vmatpush1.msra.mxu0 0.0
        %474 = vmatprep.subr.mxu0 0.0
        %475 = vmatpush1.msra.mxu0 0.0
        %476 = vmatprep.subr.mxu0 0.0
        %477 = vmatpush1.msra.mxu0 0.0
        %478 = vmatprep.subr.mxu0 0.0
        %479 = vmatpush1.msra.mxu0 0.0
        %480 = vmatprep.subr.mxu0 0.0
        %481 = vmatpush1.msra.mxu0 0.0
        %482 = vmatprep.subr.mxu0 0.0
        %483 = vmatpush1.msra.mxu0 0.0
        %484 = vmatprep.subr.mxu0 0.0
        %485 = vmatpush1.msra.mxu0 0.0
        %486 = vmatprep.subr.mxu0 0.0
        %487 = vmatpush1.msra.mxu0 0.0
        %488 = vmatprep.subr.mxu0 0.0
        %489 = vmatpush1.msra.mxu0 0.0
        %490 = vmatprep.subr.mxu0 0.0
        %491 = vmatpush1.msra.mxu0 0.0
        %492 = vmatprep.subr.mxu0 0.0
        %493 = vmatpush1.msra.mxu0 0.0
        %494 = vmatprep.subr.mxu0 0.0
        %495 = vmatpush1.msra.mxu0 0.0
        %496 = vmatprep.subr.mxu0 0.0
        %497 = vmatpush1.msra.mxu0 0.0
        %498 = vmatprep.subr.mxu0 0.0
        %499 = vmatpush1.msra.mxu0 0.0
        %500 = vmatprep.subr.mxu0 0.0
        %501 = vmatpush1.msra.mxu0 0.0
        %502 = vmatprep.subr.mxu0 0.0
        %503 = vmatpush1.msra.mxu0 0.0
        %504 = vmatprep.subr.mxu0 0.0
        %505 = vmatpush1.msra.mxu0 0.0
        %506 = vmatprep.subr.mxu0 0.0
        %507 = vmatpush1.msra.mxu0 0.0
        %508 = vmatprep.subr.mxu0 0.0
        %509 = vmatpush1.msra.mxu0 0.0
        %510 = vmatprep.subr.mxu0 0.0
        %511 = vmatpush1.msra.mxu0 0.0
        %512 = vmatprep.mubr.f32.mxu0 0.0
        %513 = vmatmul.mubr.f32.gmra.mrb[0].mxu0 %v357
        %v514 = vpop.f32.mrb[0].mxu0
        %v515 = vadd.f32 0.0, %v514
        %v516 = vpop.f32.mrb[0].mxu0
        %v517 = vadd.f32 0.0, %v516
        %518 = vmatprep.mubr.f32.mxu0 0.0
        %519 = vmatmul.mubr.f32.gmra.mrb[0].mxu0 %v360
        %v520 = vpop.f32.mrb[0].mxu0
        %v521 = vadd.f32 0.0, %v520
        %v522 = vpop.f32.mrb[0].mxu0
        %v523 = vadd.f32 0.0, %v522
        %524 = vmatprep.mubr.f32.mxu0 0.0
        %525 = vmatmul.mubr.f32.gmra.mrb[0].mxu0 %v363
        %v526 = vpop.f32.mrb[0].mxu0
        %v527 = vadd.f32 0.0, %v526
        %v528 = vpop.f32.mrb[0].mxu0
        %v529 = vadd.f32 0.0, %v528
        %530 = vdwg.mxu0
        %531 = vmatprep.subr.mxu0 %v324
        %532 = vmatpush1.msra.mxu0 %v323
        %533 = vmatprep.subr.mxu0 %v330
        %534 = vmatpush1.msra.mxu0 %v329
        %535 = vmatprep.subr.mxu0 %v336
        %536 = vmatpush1.msra.mxu0 %v335
        %537 = vmatprep.subr.mxu0 %v342
        %538 = vmatpush1.msra.mxu0 %v341
        %539 = vmatprep.subr.mxu0 %v348
        %540 = vmatpush1.msra.mxu0 %v347
        %541 = vmatprep.subr.mxu0 %v354
        %542 = vmatpush1.msra.mxu0 %v353
        %543 = vmatprep.subr.mxu0 0.0
        %544 = vmatpush1.msra.mxu0 0.0
        %545 = vmatprep.subr.mxu0 0.0
        %546 = vmatpush1.msra.mxu0 0.0
        %547 = vmatprep.subr.mxu0 0.0
        %548 = vmatpush1.msra.mxu0 0.0
        %549 = vmatprep.subr.mxu0 0.0
        %550 = vmatpush1.msra.mxu0 0.0
        %551 = vmatprep.subr.mxu0 0.0
        %552 = vmatpush1.msra.mxu0 0.0
        %553 = vmatprep.subr.mxu0 0.0
        %554 = vmatpush1.msra.mxu0 0.0
        %555 = vmatprep.subr.mxu0 0.0
        %556 = vmatpush1.msra.mxu0 0.0
        %557 = vmatprep.subr.mxu0 0.0
        %558 = vmatpush1.msra.mxu0 0.0
        %559 = vmatprep.subr.mxu0 0.0
        %560 = vmatpush1.msra.mxu0 0.0
        %561 = vmatprep.subr.mxu0 0.0
        %562 = vmatpush1.msra.mxu0 0.0
        %563 = vmatprep.subr.mxu0 0.0
        %564 = vmatpush1.msra.mxu0 0.0
        %565 = vmatprep.subr.mxu0 0.0
        %566 = vmatpush1.msra.mxu0 0.0
        %567 = vmatprep.subr.mxu0 0.0
        %568 = vmatpush1.msra.mxu0 0.0
        %569 = vmatprep.subr.mxu0 0.0
        %570 = vmatpush1.msra.mxu0 0.0
        %571 = vmatprep.subr.mxu0 0.0
        %572 = vmatpush1.msra.mxu0 0.0
        %573 = vmatprep.subr.mxu0 0.0
        %574 = vmatpush1.msra.mxu0 0.0
        %575 = vmatprep.subr.mxu0 0.0
        %576 = vmatpush1.msra.mxu0 0.0
        %577 = vmatprep.subr.mxu0 0.0
        %578 = vmatpush1.msra.mxu0 0.0
        %579 = vmatprep.subr.mxu0 0.0
        %580 = vmatpush1.msra.mxu0 0.0
        %581 = vmatprep.subr.mxu0 0.0
        %582 = vmatpush1.msra.mxu0 0.0
        %583 = vmatprep.subr.mxu0 0.0
        %584 = vmatpush1.msra.mxu0 0.0
        %585 = vmatprep.subr.mxu0 0.0
        %586 = vmatpush1.msra.mxu0 0.0
        %587 = vmatprep.subr.mxu0 0.0
        %588 = vmatpush1.msra.mxu0 0.0
        %589 = vmatprep.subr.mxu0 0.0
        %590 = vmatpush1.msra.mxu0 0.0
        %591 = vmatprep.subr.mxu0 0.0
        %592 = vmatpush1.msra.mxu0 0.0
        %593 = vmatprep.subr.mxu0 0.0
        %594 = vmatpush1.msra.mxu0 0.0
        %595 = vmatprep.mubr.f32.mxu0 0.0
        %596 = vmatmul.mubr.f32.gmra.mrb[0].mxu0 %v357
        %v597 = vpop.f32.mrb[0].mxu0
        %v598 = vadd.f32 0.0, %v597
        %v599 = vpop.f32.mrb[0].mxu0
        %v600 = vadd.f32 0.0, %v599
        %601 = vmatprep.mubr.f32.mxu0 0.0
        %602 = vmatmul.mubr.f32.gmra.mrb[0].mxu0 %v360
        %v603 = vpop.f32.mrb[0].mxu0
        %v604 = vadd.f32 0.0, %v603
        %v605 = vpop.f32.mrb[0].mxu0
        %v606 = vadd.f32 0.0, %v605
        %607 = vmatprep.mubr.f32.mxu0 0.0
        %608 = vmatmul.mubr.f32.gmra.mrb[0].mxu0 %v363
        %v609 = vpop.f32.mrb[0].mxu0
        %v610 = vadd.f32 0.0, %v609
        %v611 = vpop.f32.mrb[0].mxu0
        %v612 = vadd.f32 0.0, %v611
        %613 = vdwg.mxu0
        %v614 = vld [vmem:[#allocation5] sm:$0xff]
        %v615 = vld [vmem:[#allocation5 + $0x8] sm:$0xff]
        %v616 = vld [vmem:[#allocation5 + $0x10] sm:$0xff]
        %v617 = vld [vmem:[%s280] sm:$0xff]
        %v618 = vld [vmem:[%s280 + $0x8] sm:$0xff]
        %v619 = vld [vmem:[%s280 + $0x10] sm:$0xff]
        %v620 = vld [vmem:[%s280 + $0x18] sm:$0xff]
        %v621 = vld [vmem:[%s280 + $0x20] sm:$0xff]
        %v622 = vld [vmem:[%s280 + $0x28] sm:$0xff]
        %v623 = vld [vmem:[%s280 + $0x30] sm:$0xff]
        %v624 = vld [vmem:[%s280 + $0x38] sm:$0xff]
        %v625 = vld [vmem:[%s280 + $0x40] sm:$0xff]
        %v626 = vld [vmem:[%s280 + $0x48] sm:$0xff]
        %v627 = vld [vmem:[%s280 + $0x50] sm:$0xff]
        %v628 = vld [vmem:[%s280 + $0x58] sm:$0xff]
        %v629 = vld [vmem:[%s280 + $0x60] sm:$0xff]
        %v630 = vld [vmem:[%s280 + $0x68] sm:$0xff]
        %v631 = vld [vmem:[%s280 + $0x70] sm:$0xff]
        %v632 = vld [vmem:[%s280 + $0x78] sm:$0xff]
        %v633 = vld [vmem:[%s280 + $0x80] sm:$0xff]
        %v634 = vld [vmem:[%s280 + $0x88] sm:$0xff]
        %v635 = vld [vmem:[%s280 + $0x90] sm:$0x3]
        %v636 = vld [vmem:[%s280 + $0x98] sm:$0x3]
        %v637 = vld [vmem:[%s280 + $0xa0] sm:$0x3]
        %v638 = vld [vmem:[%s280 + $0xa8] sm:$0x3]
        %v639 = vld [vmem:[%s280 + $0xb0] sm:$0x3]
        %v640 = vld [vmem:[%s280 + $0xb8] sm:$0x3]
        %vm641 = vcmask 211968
        %v643 = vsel %vm641, %v614, 0
        %v646 = vsel %vm641, %v615, 0
        %v649 = vsel %vm641, %v616, 0
        %vm651 = vcmask 1041408
        %v653 = vsel %vm651, %v635, 0
        %v656 = vsel %vm651, %v636, 0
        %v659 = vsel %vm651, %v637, 0
        %v662 = vsel %vm651, %v638, 0
        %v665 = vsel %vm651, %v639, 0
        %v668 = vsel %vm651, %v640, 0
        %670 = vmatprep.subr.mxu0 %v618
        %671 = vmatpush1.msra.mxu0 %v617
        %672 = vmatprep.subr.mxu0 %v624
        %673 = vmatpush1.msra.mxu0 %v623
        %674 = vmatprep.subr.mxu0 %v630
        %675 = vmatpush1.msra.mxu0 %v629
        %676 = vmatprep.subr.mxu0 %v656
        %677 = vmatpush1.msra.mxu0 %v653
        %678 = vmatprep.subr.mxu0 0.0
        %679 = vmatpush1.msra.mxu0 0.0
        %680 = vmatprep.subr.mxu0 0.0
        %681 = vmatpush1.msra.mxu0 0.0
        %682 = vmatprep.subr.mxu0 0.0
        %683 = vmatpush1.msra.mxu0 0.0
        %684 = vmatprep.subr.mxu0 0.0
        %685 = vmatpush1.msra.mxu0 0.0
        %686 = vmatprep.subr.mxu0 0.0
        %687 = vmatpush1.msra.mxu0 0.0
        %688 = vmatprep.subr.mxu0 0.0
        %689 = vmatpush1.msra.mxu0 0.0
        %690 = vmatprep.subr.mxu0 0.0
        %691 = vmatpush1.msra.mxu0 0.0
        %692 = vmatprep.subr.mxu0 0.0
        %693 = vmatpush1.msra.mxu0 0.0
        %694 = vmatprep.subr.mxu0 0.0
        %695 = vmatpush1.msra.mxu0 0.0
        %696 = vmatprep.subr.mxu0 0.0
        %697 = vmatpush1.msra.mxu0 0.0
        %698 = vmatprep.subr.mxu0 0.0
        %699 = vmatpush1.msra.mxu0 0.0
        %700 = vmatprep.subr.mxu0 0.0
        %701 = vmatpush1.msra.mxu0 0.0
        %702 = vmatprep.subr.mxu0 0.0
        %703 = vmatpush1.msra.mxu0 0.0
        %704 = vmatprep.subr.mxu0 0.0
        %705 = vmatpush1.msra.mxu0 0.0
        %706 = vmatprep.subr.mxu0 0.0
        %707 = vmatpush1.msra.mxu0 0.0
        %708 = vmatprep.subr.mxu0 0.0
        %709 = vmatpush1.msra.mxu0 0.0
        %710 = vmatprep.subr.mxu0 0.0
        %711 = vmatpush1.msra.mxu0 0.0
        %712 = vmatprep.subr.mxu0 0.0
        %713 = vmatpush1.msra.mxu0 0.0
        %714 = vmatprep.subr.mxu0 0.0
        %715 = vmatpush1.msra.mxu0 0.0
        %716 = vmatprep.subr.mxu0 0.0
        %717 = vmatpush1.msra.mxu0 0.0
        %718 = vmatprep.subr.mxu0 0.0
        %719 = vmatpush1.msra.mxu0 0.0
        %720 = vmatprep.subr.mxu0 0.0
        %721 = vmatpush1.msra.mxu0 0.0
        %722 = vmatprep.subr.mxu0 0.0
        %723 = vmatpush1.msra.mxu0 0.0
        %724 = vmatprep.subr.mxu0 0.0
        %725 = vmatpush1.msra.mxu0 0.0
        %726 = vmatprep.subr.mxu0 0.0
        %727 = vmatpush1.msra.mxu0 0.0
        %728 = vmatprep.subr.mxu0 0.0
        %729 = vmatpush1.msra.mxu0 0.0
        %730 = vmatprep.subr.mxu0 0.0
        %731 = vmatpush1.msra.mxu0 0.0
        %732 = vmatprep.subr.mxu0 0.0
        %733 = vmatpush1.msra.mxu0 0.0
        %734 = vmatprep.mubr.f32.mxu0 0.0
        %735 = vmatmul.mubr.f32.gmra.mrb[0].mxu0 %v643
        %v736 = vpop.f32.mrb[0].mxu0
        %v737 = vadd.f32 0.0, %v736
        %v738 = vpop.f32.mrb[0].mxu0
        %v739 = vadd.f32 0.0, %v738
        %740 = vmatprep.mubr.f32.mxu0 0.0
        %741 = vmatmul.mubr.f32.gmra.mrb[0].mxu0 %v646
        %v742 = vpop.f32.mrb[0].mxu0
        %v743 = vadd.f32 0.0, %v742
        %v744 = vpop.f32.mrb[0].mxu0
        %v745 = vadd.f32 0.0, %v744
        %746 = vmatprep.mubr.f32.mxu0 0.0
        %747 = vmatmul.mubr.f32.gmra.mrb[0].mxu0 %v649
        %v748 = vpop.f32.mrb[0].mxu0
        %v749 = vadd.f32 0.0, %v748
        %v750 = vpop.f32.mrb[0].mxu0
        %v751 = vadd.f32 0.0, %v750
        %752 = vdwg.mxu0
        %753 = vmatprep.subr.mxu0 %v620
        %754 = vmatpush1.msra.mxu0 %v619
        %755 = vmatprep.subr.mxu0 %v626
        %756 = vmatpush1.msra.mxu0 %v625
        %757 = vmatprep.subr.mxu0 %v632
        %758 = vmatpush1.msra.mxu0 %v631
        %759 = vmatprep.subr.mxu0 %v662
        %760 = vmatpush1.msra.mxu0 %v659
        %761 = vmatprep.subr.mxu0 0.0
        %762 = vmatpush1.msra.mxu0 0.0
        %763 = vmatprep.subr.mxu0 0.0
        %764 = vmatpush1.msra.mxu0 0.0
        %765 = vmatprep.subr.mxu0 0.0
        %766 = vmatpush1.msra.mxu0 0.0
        %767 = vmatprep.subr.mxu0 0.0
        %768 = vmatpush1.msra.mxu0 0.0
        %769 = vmatprep.subr.mxu0 0.0
        %770 = vmatpush1.msra.mxu0 0.0
        %771 = vmatprep.subr.mxu0 0.0
        %772 = vmatpush1.msra.mxu0 0.0
        %773 = vmatprep.subr.mxu0 0.0
        %774 = vmatpush1.msra.mxu0 0.0
        %775 = vmatprep.subr.mxu0 0.0
        %776 = vmatpush1.msra.mxu0 0.0
        %777 = vmatprep.subr.mxu0 0.0
        %778 = vmatpush1.msra.mxu0 0.0
        %779 = vmatprep.subr.mxu0 0.0
        %780 = vmatpush1.msra.mxu0 0.0
        %781 = vmatprep.subr.mxu0 0.0
        %782 = vmatpush1.msra.mxu0 0.0
        %783 = vmatprep.subr.mxu0 0.0
        %784 = vmatpush1.msra.mxu0 0.0
        %785 = vmatprep.subr.mxu0 0.0
        %786 = vmatpush1.msra.mxu0 0.0
        %787 = vmatprep.subr.mxu0 0.0
        %788 = vmatpush1.msra.mxu0 0.0
        %789 = vmatprep.subr.mxu0 0.0
        %790 = vmatpush1.msra.mxu0 0.0
        %791 = vmatprep.subr.mxu0 0.0
        %792 = vmatpush1.msra.mxu0 0.0
        %793 = vmatprep.subr.mxu0 0.0
        %794 = vmatpush1.msra.mxu0 0.0
        %795 = vmatprep.subr.mxu0 0.0
        %796 = vmatpush1.msra.mxu0 0.0
        %797 = vmatprep.subr.mxu0 0.0
        %798 = vmatpush1.msra.mxu0 0.0
        %799 = vmatprep.subr.mxu0 0.0
        %800 = vmatpush1.msra.mxu0 0.0
        %801 = vmatprep.subr.mxu0 0.0
        %802 = vmatpush1.msra.mxu0 0.0
        %803 = vmatprep.subr.mxu0 0.0
        %804 = vmatpush1.msra.mxu0 0.0
        %805 = vmatprep.subr.mxu0 0.0
        %806 = vmatpush1.msra.mxu0 0.0
        %807 = vmatprep.subr.mxu0 0.0
        %808 = vmatpush1.msra.mxu0 0.0
        %809 = vmatprep.subr.mxu0 0.0
        %810 = vmatpush1.msra.mxu0 0.0
        %811 = vmatprep.subr.mxu0 0.0
        %812 = vmatpush1.msra.mxu0 0.0
        %813 = vmatprep.subr.mxu0 0.0
        %814 = vmatpush1.msra.mxu0 0.0
        %815 = vmatprep.subr.mxu0 0.0
        %816 = vmatpush1.msra.mxu0 0.0
        %817 = vmatprep.mubr.f32.mxu0 0.0
        %818 = vmatmul.mubr.f32.gmra.mrb[0].mxu0 %v643
        %v819 = vpop.f32.mrb[0].mxu0
        %v820 = vadd.f32 0.0, %v819
        %v821 = vpop.f32.mrb[0].mxu0
        %v822 = vadd.f32 0.0, %v821
        %823 = vmatprep.mubr.f32.mxu0 0.0
        %824 = vmatmul.mubr.f32.gmra.mrb[0].mxu0 %v646
        %v825 = vpop.f32.mrb[0].mxu0
        %v826 = vadd.f32 0.0, %v825
        %v827 = vpop.f32.mrb[0].mxu0
        %v828 = vadd.f32 0.0, %v827
        %829 = vmatprep.mubr.f32.mxu0 0.0
        %830 = vmatmul.mubr.f32.gmra.mrb[0].mxu0 %v649
        %v831 = vpop.f32.mrb[0].mxu0
        %v832 = vadd.f32 0.0, %v831
        %v833 = vpop.f32.mrb[0].mxu0
        %v834 = vadd.f32 0.0, %v833
        %835 = vdwg.mxu0
        %836 = vmatprep.subr.mxu0 %v622
        %837 = vmatpush1.msra.mxu0 %v621
        %838 = vmatprep.subr.mxu0 %v628
        %839 = vmatpush1.msra.mxu0 %v627
        %840 = vmatprep.subr.mxu0 %v634
        %841 = vmatpush1.msra.mxu0 %v633
        %842 = vmatprep.subr.mxu0 %v668
        %843 = vmatpush1.msra.mxu0 %v665
        %844 = vmatprep.subr.mxu0 0.0
        %845 = vmatpush1.msra.mxu0 0.0
        %846 = vmatprep.subr.mxu0 0.0
        %847 = vmatpush1.msra.mxu0 0.0
        %848 = vmatprep.subr.mxu0 0.0
        %849 = vmatpush1.msra.mxu0 0.0
        %850 = vmatprep.subr.mxu0 0.0
        %851 = vmatpush1.msra.mxu0 0.0
        %852 = vmatprep.subr.mxu0 0.0
        %853 = vmatpush1.msra.mxu0 0.0
        %854 = vmatprep.subr.mxu0 0.0
        %855 = vmatpush1.msra.mxu0 0.0
        %856 = vmatprep.subr.mxu0 0.0
        %857 = vmatpush1.msra.mxu0 0.0
        %858 = vmatprep.subr.mxu0 0.0
        %859 = vmatpush1.msra.mxu0 0.0
        %860 = vmatprep.subr.mxu0 0.0
        %861 = vmatpush1.msra.mxu0 0.0
        %862 = vmatprep.subr.mxu0 0.0
        %863 = vmatpush1.msra.mxu0 0.0
        %864 = vmatprep.subr.mxu0 0.0
        %865 = vmatpush1.msra.mxu0 0.0
        %866 = vmatprep.subr.mxu0 0.0
        %867 = vmatpush1.msra.mxu0 0.0
        %868 = vmatprep.subr.mxu0 0.0
        %869 = vmatpush1.msra.mxu0 0.0
        %870 = vmatprep.subr.mxu0 0.0
        %871 = vmatpush1.msra.mxu0 0.0
        %872 = vmatprep.subr.mxu0 0.0
        %873 = vmatpush1.msra.mxu0 0.0
        %874 = vmatprep.subr.mxu0 0.0
        %875 = vmatpush1.msra.mxu0 0.0
        %876 = vmatprep.subr.mxu0 0.0
        %877 = vmatpush1.msra.mxu0 0.0
        %878 = vmatprep.subr.mxu0 0.0
        %879 = vmatpush1.msra.mxu0 0.0
        %880 = vmatprep.subr.mxu0 0.0
        %881 = vmatpush1.msra.mxu0 0.0
        %882 = vmatprep.subr.mxu0 0.0
        %883 = vmatpush1.msra.mxu0 0.0
        %884 = vmatprep.subr.mxu0 0.0
        %885 = vmatpush1.msra.mxu0 0.0
        %886 = vmatprep.subr.mxu0 0.0
        %887 = vmatpush1.msra.mxu0 0.0
        %888 = vmatprep.subr.mxu0 0.0
        %889 = vmatpush1.msra.mxu0 0.0
        %890 = vmatprep.subr.mxu0 0.0
        %891 = vmatpush1.msra.mxu0 0.0
        %892 = vmatprep.subr.mxu0 0.0
        %893 = vmatpush1.msra.mxu0 0.0
        %894 = vmatprep.subr.mxu0 0.0
        %895 = vmatpush1.msra.mxu0 0.0
        %896 = vmatprep.subr.mxu0 0.0
        %897 = vmatpush1.msra.mxu0 0.0
        %898 = vmatprep.subr.mxu0 0.0
        %899 = vmatpush1.msra.mxu0 0.0
        %900 = vmatprep.mubr.f32.mxu0 0.0
        %901 = vmatmul.mubr.f32.gmra.mrb[0].mxu0 %v643
        %v902 = vpop.f32.mrb[0].mxu0
        %v903 = vadd.f32 0.0, %v902
        %v904 = vpop.f32.mrb[0].mxu0
        %v905 = vadd.f32 0.0, %v904
        %906 = vmatprep.mubr.f32.mxu0 0.0
        %907 = vmatmul.mubr.f32.gmra.mrb[0].mxu0 %v646
        %v908 = vpop.f32.mrb[0].mxu0
        %v909 = vadd.f32 0.0, %v908
        %v910 = vpop.f32.mrb[0].mxu0
        %v911 = vadd.f32 0.0, %v910
        %912 = vmatprep.mubr.f32.mxu0 0.0
        %913 = vmatmul.mubr.f32.gmra.mrb[0].mxu0 %v649
        %v914 = vpop.f32.mrb[0].mxu0
        %v915 = vadd.f32 0.0, %v914
        %v916 = vpop.f32.mrb[0].mxu0
        %v917 = vadd.f32 0.0, %v916
        %918 = vdwg.mxu0
        %v919 = vmul.f32 %v432, %v737
        %v920 = vmul.f32 %v434, %v739
        %v921 = vmul.f32 %v515, %v820
        %v922 = vmul.f32 %v517, %v822
        %v923 = vmul.f32 %v598, %v903
        %v924 = vmul.f32 %v600, %v905
        %v925 = vmul.f32 %v438, %v743
        %v926 = vmul.f32 %v440, %v745
        %v927 = vmul.f32 %v521, %v826
        %v928 = vmul.f32 %v523, %v828
        %v929 = vmul.f32 %v604, %v909
        %v930 = vmul.f32 %v606, %v911
        %v931 = vmul.f32 %v444, %v749
        %v932 = vmul.f32 %v446, %v751
        %v933 = vmul.f32 %v527, %v832
        %v934 = vmul.f32 %v529, %v834
        %v935 = vmul.f32 %v610, %v915
        %v936 = vmul.f32 %v612, %v917
        %v937 = vmul.f32 %v919, 0.02551552
        %v938 = vmul.f32 %v920, 0.02551552
        %v939 = vmul.f32 %v921, 0.02551552
        %v940 = vmul.f32 %v922, 0.02551552
        %v941 = vmul.f32 %v923, 0.02551552
        %v942 = vmul.f32 %v924, 0.02551552
        %v943 = vmul.f32 %v925, 0.02551552
        %v944 = vmul.f32 %v926, 0.02551552
        %v945 = vmul.f32 %v927, 0.02551552
        %v946 = vmul.f32 %v928, 0.02551552
        %v947 = vmul.f32 %v929, 0.02551552
        %v948 = vmul.f32 %v930, 0.02551552
        %v949 = vmul.f32 %v931, 0.02551552
        %v950 = vmul.f32 %v932, 0.02551552
        %v951 = vmul.f32 %v933, 0.02551552
        %v952 = vmul.f32 %v934, 0.02551552
        %v953 = vmul.f32 %v935, 0.02551552
        %v954 = vmul.f32 %v936, 0.02551552
        %955 = vst [vmem:[%s309] sm:$0xff] %v937
        %956 = vst [vmem:[%s309 + $0x8] sm:$0xff] %v938
        %957 = vst [vmem:[%s309 + $0x10] sm:$0xff] %v939
        %958 = vst [vmem:[%s309 + $0x18] sm:$0xff] %v940
        %959 = vst [vmem:[%s309 + $0x20] sm:$0xff] %v941
        %960 = vst [vmem:[%s309 + $0x28] sm:$0xff] %v942
        %961 = vst [vmem:[%s309 + $0x30] sm:$0xff] %v943
        %962 = vst [vmem:[%s309 + $0x38] sm:$0xff] %v944
        %963 = vst [vmem:[%s309 + $0x40] sm:$0xff] %v945
        %964 = vst [vmem:[%s309 + $0x48] sm:$0xff] %v946
        %965 = vst [vmem:[%s309 + $0x50] sm:$0xff] %v947
        %966 = vst [vmem:[%s309 + $0x58] sm:$0xff] %v948
        %967 = vst [vmem:[%s309 + $0x60] sm:$0xff] %v949
        %968 = vst [vmem:[%s309 + $0x68] sm:$0xff] %v950
        %969 = vst [vmem:[%s309 + $0x70] sm:$0xff] %v951
        %970 = vst [vmem:[%s309 + $0x78] sm:$0xff] %v952
        %971 = vst [vmem:[%s309 + $0x80] sm:$0xff] %v953
        %972 = vst [vmem:[%s309 + $0x88] sm:$0xff] %v954
        %s973 = sand.u32 %s146, 1
        %s974 = scalar_lea.sflag [#allocation4], %s973
        %s975 = sand.u32 %s146, 1
        %s976 = smul.addr %s975, 144
        %s977 = scalar_lea.vmem [#allocation9], %s976
        // Predicated region
        $region53: #{tpu_custom_call.1} parent=35 // pred_check
          %p978 = pneg %p156
        $region54: #{tpu_custom_call.1} parent=35 // pred_check_branch
          %980 = sbr.rel (%p978) target = $region56
        $region55: #{tpu_custom_call.1} parent=35 // pred_region
          %s981 = smul.u32 3, %s25
          %s982 = smul.u32 6, %s24
          %s984 = ssub.s32 2304, 2304
          %985 = vsyncadd %s974, %s984
          %s986 = smul.addr %s981, 12
          %s987 = sadd.s32 %s982, %s986
          %s988 = smul.addr %s987, 128
          %s989 = scalar_lea.hbm %s4, %s988
          %s990 = sshll.u32 %s977, 4
          %s991 = int_to_ptr.vmem [resolvable:$true] %s990
          %996 = dma.vmem_to_hbm [thread:$0]  %s991, 2304, %s989, %s974, 768, 1536, 48
        $region56: #{tpu_custom_call.1} parent=35 // pred_fallthru
          _
      $region36: #{tpu_custom_call.1} parent=5 // pred_fallthru
        _
      %p997 = scmp.le.s32.totalorder 2, %s15
      // Predicated region
      $region57: #{tpu_custom_call.1} parent=5 // pred_check
        %p998 = pneg %p997
      $region58: #{tpu_custom_call.1} parent=5 // pred_check_branch
        %1000 = sbr.rel (%p998) target = $region60
      $region59: #{tpu_custom_call.1} parent=5 // pred_region
        %s1001 = ssub.s32 %s15, 2
        // Predicated region
        $region61: #{tpu_custom_call.1} parent=59 // pred_check
          %p1002 = pneg %p162
        $region62: #{tpu_custom_call.1} parent=59 // pred_check_branch
          %1004 = sbr.rel (%p1002) target = $region64
        $region63: #{tpu_custom_call.1} parent=59 // pred_region
          %s1005 = sand.u32 %s147, 1
          %s1006 = scalar_lea.sflag [#allocation4], %s1005
          %s1007 = sand.u32 %s147, 1
          %s1008 = smul.addr %s1007, 144
          %s1009 = scalar_lea.vmem [#allocation9], %s1008
          %1010 = dma.done %s1006, 2304
        $region64: #{tpu_custom_call.1} parent=59 // pred_fallthru
          _
      $region60: #{tpu_custom_call.1} parent=5 // pred_fallthru
        _
    $region6: #{tpu_custom_call.1} parent=1 // loop_footer
      %s19 = sadd.s32 1, %s15
    $region7: #{tpu_custom_call.1} parent=1 // loop_footer_branch
      %14 = sbr.rel target = $region3
    $region8: #{tpu_custom_call.1} parent=1 // loop_exit
      _
    %1011 = vsyncpa [#allocation3], 1
    %s1012 = scalar_lea.sflag [#allocation3], 1
    %1013 = vsyncpa %s1012, 1
    %1014 = vsyncpa [#allocation6], 1
    %1015 = vsyncpa [#allocation4], 1
    %s1016 = scalar_lea.sflag [#allocation4], 1
    %1017 = vsyncpa %s1016, 1

</llo_original>
